<compile_context>
chip_gen: v6e
topology: v6e:2x2x1
jax: 0.10.0
libtpu: 0.0.40
codegen_flags: <defaults>
</compile_context>

<pallas_src>
import jax
import jax.numpy as jnp
from jax.experimental import pallas as pl
from jax.experimental.pallas import tpu as pltpu


def _round_up(x: int, m: int) -> int:
    return ((x + m - 1) // m) * m


def mlp_kernel(x_ref, w1_ref, b1_ref, w2_ref, b2_ref, out_ref):
    # fc1 on the MXU: bf16 (or f32) inputs, f32 accumulation.
    h = jnp.dot(x_ref[...], w1_ref[...], preferred_element_type=jnp.float32)
    h = h + b1_ref[...]                      # f32 bias-add (b1 kept f32)
    # Logistic activation as a single EUP push:
    #   sigmoid(x) = 0.5 * tanh(0.5 * x) + 0.5
    # (jax.nn.sigmoid lowers to exp + divide = two EUP ops per element).
    h = 0.5 * jnp.tanh(0.5 * h) + 0.5
    # fc2 on the MXU, f32 accumulation; cast activation to the weight dtype.
    o = jnp.dot(h.astype(w2_ref.dtype), w2_ref[...],
                preferred_element_type=jnp.float32)
    o = o + b2_ref[...]                      # f32 bias-add
    out_ref[...] = o.astype(out_ref.dtype)


def prepare_mlp_params(w1, b1, w2, b2, *, compute_dtype=jnp.bfloat16):
    """Pad + cast parameters ONCE (hoisted out of the per-call hot path).

    Feature dims are zero-padded to multiples of 128 so every load/store in
    the kernel is lane-dense.  Correctness under padding: padded hidden
    columns give sigmoid(0)=0.5 but multiply zero rows of the padded W2;
    padded input columns hit zero rows of W1; padded batch rows are sliced
    off after the call.
    """
    K, H = w1.shape
    H2, O = w2.shape
    assert H2 == H and b1.shape == (H,) and b2.shape == (O,)
    Kp, Hp, Op = _round_up(K, 128), _round_up(H, 128), _round_up(O, 128)
    w1p = jnp.pad(w1, ((0, Kp - K), (0, Hp - H))).astype(compute_dtype)
    w2p = jnp.pad(w2, ((0, Hp - H), (0, Op - O))).astype(compute_dtype)
    b1p = jnp.pad(b1, (0, Hp - H)).astype(jnp.float32).reshape(1, Hp)
    b2p = jnp.pad(b2, (0, Op - O)).astype(jnp.float32).reshape(1, Op)
    return dict(w1p=w1p, b1p=b1p, w2p=w2p, b2p=b2p,
                dims=(K, H, O, Kp, Hp, Op), compute_dtype=compute_dtype)


def mlp_forward_prepared(x, params, *, batch_tile=128):
    """out = sigmoid(x @ w1 + b1) @ w2 + b2 using pre-padded/cast params."""
    K, H, O, Kp, Hp, Op = params["dims"]
    w1p, b1p = params["w1p"], params["b1p"]
    w2p, b2p = params["w2p"], params["b2p"]
    compute_dtype = params["compute_dtype"]

    B, Kx = x.shape
    assert Kx == K
    out_dtype = x.dtype

    # Batch tile: multiple of 8 (sublanes).  When the batch allows, keep >=2
    # grid steps so v7x's second TensorCore gets a tile (megacore sharding
    # via dimension_semantics=("parallel",)); neutral on v5e/v6e.
    TB = min(batch_tile, _round_up(B, 8))
    if B >= 16 and _round_up(B, TB) // TB < 2:
        TB = _round_up((B + 1) // 2, 8)
    Bp = _round_up(B, TB)

    # Pad/cast x only when needed (skip entirely for aligned, pre-cast inputs).
    if (Bp, Kp) == (B, K) and x.dtype == compute_dtype:
        xp = x
    else:
        xp = jnp.pad(x, ((0, Bp - B), (0, Kp - K))).astype(compute_dtype)

    # Explicit VMEM budget: single-buffered resident weights + biases,
    # double-buffered x/out tiles, f32 hidden intermediate, 2x headroom.
    cbytes = jnp.dtype(compute_dtype).itemsize
    obytes_i = jnp.dtype(out_dtype).itemsize
    working_set = ((Kp * Hp + Hp * Op) * cbytes      # resident weights (1 buf)
                   + (Hp + Op) * 4                   # resident biases (f32)
                   + 2 * TB * Kp * cbytes            # x tile, double-buffered
                   + 2 * TB * Op * obytes_i          # out tile, double-buffered
                   + TB * Hp * 4)                    # f32 hidden intermediate
    vmem_limit = int(min(2 * working_set + (4 << 20), 64 << 20))

    resident = dict(pipeline_mode=pl.Buffered(buffer_count=1))

    out_padded = pl.pallas_call(
        mlp_kernel,
        out_shape=jax.ShapeDtypeStruct((Bp, Op), out_dtype),
        grid=(Bp // TB,),
        in_specs=[
            pl.BlockSpec((TB, Kp), lambda i: (i, 0)),               # x tile
            pl.BlockSpec((Kp, Hp), lambda i: (0, 0), **resident),   # W1 resident
            pl.BlockSpec((1, Hp), lambda i: (0, 0), **resident),    # b1
            pl.BlockSpec((Hp, Op), lambda i: (0, 0), **resident),   # W2 resident
            pl.BlockSpec((1, Op), lambda i: (0, 0), **resident),    # b2
        ],
        out_specs=pl.BlockSpec((TB, Op), lambda i: (i, 0)),          # lane-dense
        compiler_params=pltpu.CompilerParams(
            dimension_semantics=("parallel",),
            vmem_limit_bytes=vmem_limit),
    )(xp, w1p, b1p, w2p, b2p)

    return out_padded[:B, :O]


def mlp_forward(x, w1, b1, w2, b2, *, compute_dtype=jnp.bfloat16,
                batch_tile=128):
    """Convenience wrapper: prepare params and run the fused MLP kernel."""
    params = prepare_mlp_params(w1, b1, w2, b2, compute_dtype=compute_dtype)
    return mlp_forward_prepared(x, params, batch_tile=batch_tile)


if __name__ == "__main__":
    # Module hyperparameters (small, consistent with the MLP's forward).
    batch_size = 8
    input_size = 16
    hidden_size = 32
    output_size = 8

    key = jax.random.PRNGKey(0)
    kx, kw1, kb1, kw2, kb2 = jax.random.split(key, 5)

    # Deterministic synthetic parameters (PyTorch-style uniform init ranges).
    x = jax.random.normal(kx, (batch_size, input_size), dtype=jnp.float32)
    lim1 = 1.0 / (input_size ** 0.5)
    w1 = jax.random.uniform(kw1, (input_size, hidden_size),
                            minval=-lim1, maxval=lim1, dtype=jnp.float32)
    b1 = jax.random.uniform(kb1, (hidden_size,),
                            minval=-lim1, maxval=lim1, dtype=jnp.float32)
    lim2 = 1.0 / (hidden_size ** 0.5)
    w2 = jax.random.uniform(kw2, (hidden_size, output_size),
                            minval=-lim2, maxval=lim2, dtype=jnp.float32)
    b2 = jax.random.uniform(kb2, (output_size,),
                            minval=-lim2, maxval=lim2, dtype=jnp.float32)

    # Plain-JAX reference (same math as the PyTorch module).
    ref = jax.nn.sigmoid(x @ w1 + b1) @ w2 + b2

    # Exact f32 path (tight tolerance).
    params_f32 = prepare_mlp_params(w1, b1, w2, b2, compute_dtype=jnp.float32)
    out_f32 = jax.block_until_ready(mlp_forward_prepared(x, params_f32))
    assert out_f32.shape == (batch_size, output_size)
    assert jnp.allclose(out_f32, ref, atol=1e-5, rtol=1e-5)

    # Default bf16 path (MXU-native dtype, f32 accumulation everywhere).
    params_bf16 = prepare_mlp_params(w1, b1, w2, b2, compute_dtype=jnp.bfloat16)
    out_bf16 = jax.block_until_ready(mlp_forward_prepared(x, params_bf16))
    assert out_bf16.shape == (batch_size, output_size)
    assert jnp.allclose(out_bf16, ref, atol=5e-2, rtol=5e-2)

    print("KERNEL_OK")
</pallas_src>

<mosaic_0001>
module attributes {stable_mosaic.version = 11 : i64} {
  func.func @mlp_kernel(%arg0: i32, %arg1: memref<8x128xf32, #tpu.memory_space<vmem>>, %arg2: memref<128x128xf32, #tpu.memory_space<vmem>>, %arg3: memref<1x128xf32, #tpu.memory_space<vmem>>, %arg4: memref<128x128xf32, #tpu.memory_space<vmem>>, %arg5: memref<1x128xf32, #tpu.memory_space<vmem>>, %arg6: memref<8x128xf32, #tpu.memory_space<vmem>>) attributes {dimension_semantics = [#tpu.dimension_semantics<parallel>], iteration_bounds = array<i64: 1>, scalar_prefetch = 0 : i64, scratch_operands = 0 : i64, tpu.core_type = #tpu.core_type<tc>, window_params = [{transform_indices = @transform_0, window_bounds = array<i64: 8, 128>}, {pipeline_mode = #tpu.pipeline_mode<synchronous>, transform_indices = @transform_1, window_bounds = array<i64: 128, 128>}, {pipeline_mode = #tpu.pipeline_mode<synchronous>, transform_indices = @transform_2, window_bounds = array<i64: 1, 128>}, {pipeline_mode = #tpu.pipeline_mode<synchronous>, transform_indices = @transform_3, window_bounds = array<i64: 128, 128>}, {pipeline_mode = #tpu.pipeline_mode<synchronous>, transform_indices = @transform_4, window_bounds = array<i64: 1, 128>}, {transform_indices = @transform_5, window_bounds = array<i64: 8, 128>}]} {
    %c0 = arith.constant 0 : index
    %c0_0 = arith.constant 0 : index
    %0 = vector.load %arg1[%c0, %c0_0] : memref<8x128xf32, #tpu.memory_space<vmem>>, vector<8x128xf32>
    %c0_1 = arith.constant 0 : index
    %c0_2 = arith.constant 0 : index
    %1 = vector.load %arg2[%c0_1, %c0_2] : memref<128x128xf32, #tpu.memory_space<vmem>>, vector<128x128xf32>
    %cst = arith.constant dense<0.000000e+00> : vector<8x128xf32>
    %2 = tpu.matmul %0, %1, %cst {dimension_numbers = #tpu.dot_dimension_numbers<[1], [0], [0], [1], [0, 0, 1, 1], [], []>} : vector<8x128xf32>, vector<128x128xf32>, vector<8x128xf32> -> vector<8x128xf32>
    %c0_3 = arith.constant 0 : index
    %c0_4 = arith.constant 0 : index
    %3 = vector.load %arg3[%c0_3, %c0_4] : memref<1x128xf32, #tpu.memory_space<vmem>>, vector<1x128xf32>
    %4 = vector.broadcast %3 : vector<1x128xf32> to vector<8x128xf32>
    %5 = arith.addf %2, %4 : vector<8x128xf32>
    %cst_5 = arith.constant 5.000000e-01 : f32
    %6 = vector.broadcast %cst_5 : f32 to vector<8x128xf32>
    %7 = arith.mulf %6, %5 : vector<8x128xf32>
    %8 = math.tanh %7 : vector<8x128xf32>
    %cst_6 = arith.constant 5.000000e-01 : f32
    %9 = vector.broadcast %cst_6 : f32 to vector<8x128xf32>
    %10 = arith.mulf %9, %8 : vector<8x128xf32>
    %cst_7 = arith.constant 5.000000e-01 : f32
    %11 = vector.broadcast %cst_7 : f32 to vector<8x128xf32>
    %12 = arith.addf %10, %11 : vector<8x128xf32>
    %c0_8 = arith.constant 0 : index
    %c0_9 = arith.constant 0 : index
    %13 = vector.load %arg4[%c0_8, %c0_9] : memref<128x128xf32, #tpu.memory_space<vmem>>, vector<128x128xf32>
    %cst_10 = arith.constant dense<0.000000e+00> : vector<8x128xf32>
    %14 = tpu.matmul %12, %13, %cst_10 {dimension_numbers = #tpu.dot_dimension_numbers<[1], [0], [0], [1], [0, 0, 1, 1], [], []>} : vector<8x128xf32>, vector<128x128xf32>, vector<8x128xf32> -> vector<8x128xf32>
    %c0_11 = arith.constant 0 : index
    %c0_12 = arith.constant 0 : index
    %15 = vector.load %arg5[%c0_11, %c0_12] : memref<1x128xf32, #tpu.memory_space<vmem>>, vector<1x128xf32>
    %16 = vector.broadcast %15 : vector<1x128xf32> to vector<8x128xf32>
    %17 = arith.addf %14, %16 : vector<8x128xf32>
    %c0_13 = arith.constant 0 : index
    %c0_14 = arith.constant 0 : index
    %18 = vector.load %arg6[%c0_13, %c0_14] : memref<8x128xf32, #tpu.memory_space<vmem>>, vector<8x128xf32>
    tpu.vector_store %arg6[%c0_13, %c0_14], %17 {strides = array<i32>} : memref<8x128xf32, #tpu.memory_space<vmem>>, vector<8x128xf32>,
    return
  }
  func.func @transform_0(%arg0: i32) -> (i32, i32) {
    %c0_i32 = arith.constant 0 : i32
    %c0_i32_0 = arith.constant 0 : i32
    return %arg0, %c0_i32 : i32, i32
  }
  func.func @transform_1(%arg0: i32) -> (i32, i32) {
    %c0_i32 = arith.constant 0 : i32
    %c0_i32_0 = arith.constant 0 : i32
    %c0_i32_1 = arith.constant 0 : i32
    return %c0_i32, %c0_i32_0 : i32, i32
  }
  func.func @transform_2(%arg0: i32) -> (i32, i32) {
    %c0_i32 = arith.constant 0 : i32
    %c0_i32_0 = arith.constant 0 : i32
    %c0_i32_1 = arith.constant 0 : i32
    return %c0_i32, %c0_i32_0 : i32, i32
  }
  func.func @transform_3(%arg0: i32) -> (i32, i32) {
    %c0_i32 = arith.constant 0 : i32
    %c0_i32_0 = arith.constant 0 : i32
    %c0_i32_1 = arith.constant 0 : i32
    return %c0_i32, %c0_i32_0 : i32, i32
  }
  func.func @transform_4(%arg0: i32) -> (i32, i32) {
    %c0_i32 = arith.constant 0 : i32
    %c0_i32_0 = arith.constant 0 : i32
    %c0_i32_1 = arith.constant 0 : i32
    return %c0_i32, %c0_i32_0 : i32, i32
  }
  func.func @transform_5(%arg0: i32) -> (i32, i32) {
    %c0_i32 = arith.constant 0 : i32
    %c0_i32_0 = arith.constant 0 : i32
    return %arg0, %c0_i32 : i32, i32
  }
}

</mosaic_0001>

<llo_original>
// kernel: tpu_custom_call.1
$region0: #{tpu_custom_call.1}
  #allocation0 [shape = 'u32[]', space=smem, size = 0x4, offset = 0x4, fixed_abs, tag = 'smem constant byte address 0x4 - core index']
  #allocation1 [shape = 'u32[144,128]{1,0:T(1,128)}', space=vmem, size = 0x12000, scoped, tag = 'internal scratch']
  %s0 = inlined_call_operand.hbm [shape: f32[8,128], index: 0, kind: input, shape index: {}]
  %s1 = inlined_call_operand.hbm [shape: f32[128,128], index: 1, kind: input, shape index: {}]
  %s2 = inlined_call_operand.vmem [shape: f32[1,128], index: 2, kind: input, shape index: {}]
  %s3 = inlined_call_operand.hbm [shape: f32[128,128], index: 3, kind: input, shape index: {}]
  %s4 = inlined_call_operand.vmem [shape: f32[1,128], index: 4, kind: input, shape index: {}]
  %s5 = inlined_call_operand.hbm [shape: f32[8,128], index: 5, kind: output, shape index: {}]
  %s6 = sld [smem:[#allocation0]]
  $region42: #{tpu_custom_call.1} parent=0
    _
  %s8 = ssub.s32 1, %s6
  %s9 = scalar_select 0, %s8, %s6
  $region1: #{tpu_custom_call.1} parent=0
    #allocation2 [shape = 'u8[4096]{0}', space=vmem, size = 0x1000, scoped, tag = 'input window, operand 0, single buffered']
    #allocation3 [shape = 's32[1]{0}', space=sflag, size = 0x4, scoped, tag = 'scoped memory for tpu_custom_call.1']
    #allocation4 [shape = 's32[1]{0}', space=sflag, size = 0x4, scoped, tag = 'scoped memory for tpu_custom_call.1']
    #allocation5 [shape = 'u8[65536]{0}', space=vmem, size = 0x10000, scoped, tag = 'input window, operand 1, single buffered']
    #allocation6 [shape = 's32[1]{0}', space=sflag, size = 0x4, scoped, tag = 'scoped memory for tpu_custom_call.1']
    #allocation7 [shape = 'u8[65536]{0}', space=vmem, size = 0x10000, scoped, tag = 'input window, operand 3, single buffered']
    #allocation8 [shape = 'u8[4096]{0}', space=vmem, size = 0x1000, scoped, tag = 'output window, operand 0, single buffered']
    %10 = vsyncpa [#allocation3], 0
    %11 = vsyncpa [#allocation6], 0
    %12 = vsyncpa [#allocation4], 0
    // Predicated region
    $region2: #{tpu_custom_call.1} parent=1 // pred_check
      _
    $region3: #{tpu_custom_call.1} parent=1 // pred_check_branch
      %14 = sbr.rel (0) target = $region5
    $region4: #{tpu_custom_call.1} parent=1 // pred_region
      %s16 = ssub.s32 128, 128
      %17 = vsyncadd [#allocation3], %s16
      %s19 = sshll.u32 [#allocation2], 4
      %s20 = int_to_ptr.vmem [resolvable:$true] %s19
      %22 = dma.hbm_to_vmem [thread:$0]  %s0, 128, %s20, [#allocation3]
    $region5: #{tpu_custom_call.1} parent=1 // pred_fallthru
      _
    // Predicated region
    $region6: #{tpu_custom_call.1} parent=1 // pred_check
      _
    $region7: #{tpu_custom_call.1} parent=1 // pred_check_branch
      %24 = sbr.rel (0) target = $region9
    $region8: #{tpu_custom_call.1} parent=1 // pred_region
      %s26 = ssub.s32 2048, 2048
      %27 = vsyncadd [#allocation6], %s26
      %s28 = sshll.u32 [#allocation5], 4
      %s29 = int_to_ptr.vmem [resolvable:$true] %s28
      %34 = dma.hbm_to_vmem [thread:$0]  %s1, 2048, %s29, [#allocation6], 128, 128, 8
    $region9: #{tpu_custom_call.1} parent=1 // pred_fallthru
      _
    // Predicated region
    $region10: #{tpu_custom_call.1} parent=1 // pred_check
      _
    $region11: #{tpu_custom_call.1} parent=1 // pred_check_branch
      %36 = sbr.rel (0) target = $region13
    $region12: #{tpu_custom_call.1} parent=1 // pred_region
      _
    $region13: #{tpu_custom_call.1} parent=1 // pred_fallthru
      _
    // Predicated region
    $region14: #{tpu_custom_call.1} parent=1 // pred_check
      _
    $region15: #{tpu_custom_call.1} parent=1 // pred_check_branch
      %38 = sbr.rel (0) target = $region17
    $region16: #{tpu_custom_call.1} parent=1 // pred_region
      %s40 = ssub.s32 2048, 2048
      %41 = vsyncadd [#allocation6], %s40
      %s42 = sshll.u32 [#allocation7], 4
      %s43 = int_to_ptr.vmem [resolvable:$true] %s42
      %48 = dma.hbm_to_vmem [thread:$0]  %s3, 2048, %s43, [#allocation6], 128, 128, 8
    $region17: #{tpu_custom_call.1} parent=1 // pred_fallthru
      _
    // Predicated region
    $region18: #{tpu_custom_call.1} parent=1 // pred_check
      _
    $region19: #{tpu_custom_call.1} parent=1 // pred_check_branch
      %50 = sbr.rel (0) target = $region21
    $region20: #{tpu_custom_call.1} parent=1 // pred_region
      _
    $region21: #{tpu_custom_call.1} parent=1 // pred_fallthru
      _
    // Predicated region
    $region22: #{tpu_custom_call.1} parent=1 // pred_check
      _
    $region23: #{tpu_custom_call.1} parent=1 // pred_check_branch
      %52 = sbr.rel (0) target = $region25
    $region24: #{tpu_custom_call.1} parent=1 // pred_region
      %53 = dma.done [#allocation3], 128
    $region25: #{tpu_custom_call.1} parent=1 // pred_fallthru
      _
    // Predicated region
    $region26: #{tpu_custom_call.1} parent=1 // pred_check
      _
    $region27: #{tpu_custom_call.1} parent=1 // pred_check_branch
      %55 = sbr.rel (0) target = $region29
    $region28: #{tpu_custom_call.1} parent=1 // pred_region
      %56 = dma.done [#allocation6], 2048
    $region29: #{tpu_custom_call.1} parent=1 // pred_fallthru
      _
    // Predicated region
    $region30: #{tpu_custom_call.1} parent=1 // pred_check
      _
    $region31: #{tpu_custom_call.1} parent=1 // pred_check_branch
      %58 = sbr.rel (0) target = $region33
    $region32: #{tpu_custom_call.1} parent=1 // pred_region
      %59 = dma.done [#allocation6], 2048
    $region33: #{tpu_custom_call.1} parent=1 // pred_fallthru
      _
    %v60 = vld [vmem:[#allocation2] sm:$0xff]
    %v61 = vld [vmem:[#allocation5] sm:$0xff]
    %v62 = vld [vmem:[#allocation5 + $0x8] sm:$0xff]
    %v63 = vld [vmem:[#allocation5 + $0x10] sm:$0xff]
    %v64 = vld [vmem:[#allocation5 + $0x18] sm:$0xff]
    %v65 = vld [vmem:[#allocation5 + $0x20] sm:$0xff]
    %v66 = vld [vmem:[#allocation5 + $0x28] sm:$0xff]
    %v67 = vld [vmem:[#allocation5 + $0x30] sm:$0xff]
    %v68 = vld [vmem:[#allocation5 + $0x38] sm:$0xff]
    %v69 = vld [vmem:[#allocation5 + $0x40] sm:$0xff]
    %v70 = vld [vmem:[#allocation5 + $0x48] sm:$0xff]
    %v71 = vld [vmem:[#allocation5 + $0x50] sm:$0xff]
    %v72 = vld [vmem:[#allocation5 + $0x58] sm:$0xff]
    %v73 = vld [vmem:[#allocation5 + $0x60] sm:$0xff]
    %v74 = vld [vmem:[#allocation5 + $0x68] sm:$0xff]
    %v75 = vld [vmem:[#allocation5 + $0x70] sm:$0xff]
    %v76 = vld [vmem:[#allocation5 + $0x78] sm:$0xff]
    %v77 = vld [vmem:[%s2] sm:$0x1]
    %v79 = vlaneseq
    %v80 = vshrl.u32 %v79, 7
    %v81 = vsub.s32 0, %v80
    %v82 = vrot.slane %v77, %v81
    %84 = vmatprep.subr.mxu0 0.0
    %85 = vmatpush1.msra.mxu0 %v76
    %86 = vmatprep.subr.mxu0 0.0
    %87 = vmatpush1.msra.mxu0 %v75
    %88 = vmatprep.subr.mxu0 0.0
    %89 = vmatpush1.msra.mxu0 %v74
    %90 = vmatprep.subr.mxu0 0.0
    %91 = vmatpush1.msra.mxu0 %v73
    %92 = vmatprep.subr.mxu0 0.0
    %93 = vmatpush1.msra.mxu0 %v72
    %94 = vmatprep.subr.mxu0 0.0
    %95 = vmatpush1.msra.mxu0 %v71
    %96 = vmatprep.subr.mxu0 0.0
    %97 = vmatpush1.msra.mxu0 %v70
    %98 = vmatprep.subr.mxu0 0.0
    %99 = vmatpush1.msra.mxu0 %v69
    %100 = vmatprep.subr.mxu0 0.0
    %101 = vmatpush1.msra.mxu0 %v68
    %102 = vmatprep.subr.mxu0 0.0
    %103 = vmatpush1.msra.mxu0 %v67
    %104 = vmatprep.subr.mxu0 0.0
    %105 = vmatpush1.msra.mxu0 %v66
    %106 = vmatprep.subr.mxu0 0.0
    %107 = vmatpush1.msra.mxu0 %v65
    %108 = vmatprep.subr.mxu0 0.0
    %109 = vmatpush1.msra.mxu0 %v64
    %110 = vmatprep.subr.mxu0 0.0
    %111 = vmatpush1.msra.mxu0 %v63
    %112 = vmatprep.subr.mxu0 0.0
    %113 = vmatpush1.msra.mxu0 %v62
    %114 = vmatprep.subr.mxu0 0.0
    %115 = vmatpush1.msra.mxu0 %v61
    %116 = vmatprep.subr.mxu0 0.0
    %117 = vmatpush2.msra.mxu0 0.0
    %118 = vmatprep.subr.mxu0 0.0
    %119 = vmatpush2.msra.mxu0 0.0
    %120 = vmatprep.subr.mxu0 0.0
    %121 = vmatpush2.msra.mxu0 0.0
    %122 = vmatprep.subr.mxu0 0.0
    %123 = vmatpush2.msra.mxu0 0.0
    %124 = vmatprep.subr.mxu0 0.0
    %125 = vmatpush2.msra.mxu0 0.0
    %126 = vmatprep.subr.mxu0 0.0
    %127 = vmatpush2.msra.mxu0 0.0
    %128 = vmatprep.subr.mxu0 0.0
    %129 = vmatpush2.msra.mxu0 0.0
    %130 = vmatprep.subr.mxu0 0.0
    %131 = vmatpush2.msra.mxu0 0.0
    %132 = vmatprep.subr.mxu0 0.0
    %133 = vmatpush2.msra.mxu0 0.0
    %134 = vmatprep.subr.mxu0 0.0
    %135 = vmatpush2.msra.mxu0 0.0
    %136 = vmatprep.subr.mxu0 0.0
    %137 = vmatpush2.msra.mxu0 0.0
    %138 = vmatprep.subr.mxu0 0.0
    %139 = vmatpush2.msra.mxu0 0.0
    %140 = vmatprep.subr.mxu0 0.0
    %141 = vmatpush2.msra.mxu0 0.0
    %142 = vmatprep.subr.mxu0 0.0
    %143 = vmatpush2.msra.mxu0 0.0
    %144 = vmatprep.subr.mxu0 0.0
    %145 = vmatpush2.msra.mxu0 0.0
    %146 = vmatprep.subr.mxu0 0.0
    %147 = vmatpush2.msra.mxu0 0.0
    %148 = vmatprep.mubr.f32.mxu0 0.0
    %149 = vmatmul.mubr.f32.gmra.mxu0 %v60
    %v150 = vpop.f32.mrf.mxu0
    %v151 = vadd.f32 %v82, %v150
    %v152 = vpop.f32.mrf.mxu0
    %153 = vdwg.mxu0
    %v154 = vmul.f32 %v151, 0.5
    %v155 = vtanh.pop %v154
    %v156 = vmul.f32 %v155, 0.5
    %v157 = vadd.f32 %v156, 0.5
    %v158 = vld [vmem:[#allocation7] sm:$0xff]
    %v159 = vld [vmem:[#allocation7 + $0x8] sm:$0xff]
    %v160 = vld [vmem:[#allocation7 + $0x10] sm:$0xff]
    %v161 = vld [vmem:[#allocation7 + $0x18] sm:$0xff]
    %v162 = vld [vmem:[#allocation7 + $0x20] sm:$0xff]
    %v163 = vld [vmem:[#allocation7 + $0x28] sm:$0xff]
    %v164 = vld [vmem:[#allocation7 + $0x30] sm:$0xff]
    %v165 = vld [vmem:[#allocation7 + $0x38] sm:$0xff]
    %v166 = vld [vmem:[#allocation7 + $0x40] sm:$0xff]
    %v167 = vld [vmem:[#allocation7 + $0x48] sm:$0xff]
    %v168 = vld [vmem:[#allocation7 + $0x50] sm:$0xff]
    %v169 = vld [vmem:[#allocation7 + $0x58] sm:$0xff]
    %v170 = vld [vmem:[#allocation7 + $0x60] sm:$0xff]
    %v171 = vld [vmem:[#allocation7 + $0x68] sm:$0xff]
    %v172 = vld [vmem:[#allocation7 + $0x70] sm:$0xff]
    %v173 = vld [vmem:[#allocation7 + $0x78] sm:$0xff]
    %v174 = vld [vmem:[%s4] sm:$0x1]
    %v176 = vlaneseq
    %v177 = vshrl.u32 %v176, 7
    %v178 = vsub.s32 0, %v177
    %v179 = vrot.slane %v174, %v178
    %181 = vmatprep.subr.mxu0 0.0
    %182 = vmatpush1.msra.mxu0 %v173
    %183 = vmatprep.subr.mxu0 0.0
    %184 = vmatpush1.msra.mxu0 %v172
    %185 = vmatprep.subr.mxu0 0.0
    %186 = vmatpush1.msra.mxu0 %v171
    %187 = vmatprep.subr.mxu0 0.0
    %188 = vmatpush1.msra.mxu0 %v170
    %189 = vmatprep.subr.mxu0 0.0
    %190 = vmatpush1.msra.mxu0 %v169
    %191 = vmatprep.subr.mxu0 0.0
    %192 = vmatpush1.msra.mxu0 %v168
    %193 = vmatprep.subr.mxu0 0.0
    %194 = vmatpush1.msra.mxu0 %v167
    %195 = vmatprep.subr.mxu0 0.0
    %196 = vmatpush1.msra.mxu0 %v166
    %197 = vmatprep.subr.mxu0 0.0
    %198 = vmatpush1.msra.mxu0 %v165
    %199 = vmatprep.subr.mxu0 0.0
    %200 = vmatpush1.msra.mxu0 %v164
    %201 = vmatprep.subr.mxu0 0.0
    %202 = vmatpush1.msra.mxu0 %v163
    %203 = vmatprep.subr.mxu0 0.0
    %204 = vmatpush1.msra.mxu0 %v162
    %205 = vmatprep.subr.mxu0 0.0
    %206 = vmatpush1.msra.mxu0 %v161
    %207 = vmatprep.subr.mxu0 0.0
    %208 = vmatpush1.msra.mxu0 %v160
    %209 = vmatprep.subr.mxu0 0.0
    %210 = vmatpush1.msra.mxu0 %v159
    %211 = vmatprep.subr.mxu0 0.0
    %212 = vmatpush1.msra.mxu0 %v158
    %213 = vmatprep.subr.mxu0 0.0
    %214 = vmatpush2.msra.mxu0 0.0
    %215 = vmatprep.subr.mxu0 0.0
    %216 = vmatpush2.msra.mxu0 0.0
    %217 = vmatprep.subr.mxu0 0.0
    %218 = vmatpush2.msra.mxu0 0.0
    %219 = vmatprep.subr.mxu0 0.0
    %220 = vmatpush2.msra.mxu0 0.0
    %221 = vmatprep.subr.mxu0 0.0
    %222 = vmatpush2.msra.mxu0 0.0
    %223 = vmatprep.subr.mxu0 0.0
    %224 = vmatpush2.msra.mxu0 0.0
    %225 = vmatprep.subr.mxu0 0.0
    %226 = vmatpush2.msra.mxu0 0.0
    %227 = vmatprep.subr.mxu0 0.0
    %228 = vmatpush2.msra.mxu0 0.0
    %229 = vmatprep.subr.mxu0 0.0
    %230 = vmatpush2.msra.mxu0 0.0
    %231 = vmatprep.subr.mxu0 0.0
    %232 = vmatpush2.msra.mxu0 0.0
    %233 = vmatprep.subr.mxu0 0.0
    %234 = vmatpush2.msra.mxu0 0.0
    %235 = vmatprep.subr.mxu0 0.0
    %236 = vmatpush2.msra.mxu0 0.0
    %237 = vmatprep.subr.mxu0 0.0
    %238 = vmatpush2.msra.mxu0 0.0
    %239 = vmatprep.subr.mxu0 0.0
    %240 = vmatpush2.msra.mxu0 0.0
    %241 = vmatprep.subr.mxu0 0.0
    %242 = vmatpush2.msra.mxu0 0.0
    %243 = vmatprep.subr.mxu0 0.0
    %244 = vmatpush2.msra.mxu0 0.0
    %245 = vmatprep.mubr.f32.mxu0 0.0
    %246 = vmatmul.mubr.f32.gmra.mxu0 %v157
    %v247 = vpop.f32.mrf.mxu0
    %v248 = vadd.f32 %v179, %v247
    %v249 = vpop.f32.mrf.mxu0
    %250 = vdwg.mxu0
    %251 = vst [vmem:[#allocation8] sm:$0xff] %v248
    // Predicated region
    $region34: #{tpu_custom_call.1} parent=1 // pred_check
      _
    $region35: #{tpu_custom_call.1} parent=1 // pred_check_branch
      %253 = sbr.rel (0) target = $region37
    $region36: #{tpu_custom_call.1} parent=1 // pred_region
      %s255 = ssub.s32 128, 128
      %256 = vsyncadd [#allocation4], %s255
      %s258 = sshll.u32 [#allocation8], 4
      %s259 = int_to_ptr.vmem [resolvable:$true] %s258
      %261 = dma.vmem_to_hbm [thread:$0]  %s259, 128, %s5, [#allocation4]
    $region37: #{tpu_custom_call.1} parent=1 // pred_fallthru
      _
    // Predicated region
    $region38: #{tpu_custom_call.1} parent=1 // pred_check
      _
    $region39: #{tpu_custom_call.1} parent=1 // pred_check_branch
      %263 = sbr.rel (0) target = $region41
    $region40: #{tpu_custom_call.1} parent=1 // pred_region
      %264 = dma.done [#allocation4], 128
    $region41: #{tpu_custom_call.1} parent=1 // pred_fallthru
      _
    %265 = vsyncpa [#allocation3], 1
    %266 = vsyncpa [#allocation6], 1
    %267 = vsyncpa [#allocation4], 1

</llo_original>
